<compile_context>
chip_gen: v5e
topology: v5e:2x2
jax: 0.10.0
libtpu: 0.0.40
codegen_flags: <defaults>
</compile_context>

<pallas_src>
import functools
import math

import jax
import jax.numpy as jnp
from jax import lax
from jax.experimental import pallas as pl
from jax.experimental.pallas import tpu as pltpu


_LANES = 128                         # lanes per vreg row
_VMEM_LIMIT_BYTES = 32 * 1024 * 1024
_GOLDEN = 0x9E3779B9                 # seed-spreading constant
_SALT_SCA = 0x85EBCA6B               # distinct salts -> decorrelated sca / vec masks
_SALT_VEC = 0xC2B2AE35
_SALT_SYNC = 0x01000193              # shared salt -> identical per-row mask for sca & vec
_MASK24 = 0x00FFFFFF


def _ceil_div(a, b):
    return -(-a // b)


def _target_tile_bytes():
    """Per-input block byte target.  ~VMEM/48 keeps the 4 live slabs per step
    (in + out, double-buffered) well inside the scoped limit on v5e/v6e/v7x."""
    vmem = 64 * 1024 * 1024
    try:
        vmem = int(pltpu.get_tpu_info().vmem_capacity_bytes)
    except Exception:
        pass
    return int(min(4 << 20, max(512 << 10, vmem // 48)))


def _tile_rows(rows, width, itemsize):
    tr = (_target_tile_bytes() // max(1, width * itemsize)) // 8 * 8
    tr = max(8, tr)
    # Either a multiple of 8 (sublane rule) or the full row extent; ragged
    # trailing blocks are handled by Pallas' masked writeback (no whole-slab
    # fallback for large inputs).
    return rows if tr >= rows else tr


def _mix32(x):
    """lowbias32-style 2-multiply avalanche on uint32 lanes (pure int VPU ops)."""
    x = x ^ (x >> 16)
    x = x * jnp.uint32(0x7FEB352D)
    x = x ^ (x >> 15)
    x = x * jnp.uint32(0x846CA68B)
    x = x ^ (x >> 16)
    return x


def _keep_mask(idx_u32, seed_u32, salt, thresh):
    """keep = hash(index, seed, salt) >= thresh on 24 hash bits (integer compare)."""
    h = _mix32(idx_u32 ^ (seed_u32 * jnp.uint32(_GOLDEN) + jnp.uint32(salt)))
    return (h & jnp.uint32(_MASK24)) >= jnp.uint32(thresh)


# ---------------------------------------------------------------------------
# Kernels
# ---------------------------------------------------------------------------

def _elem_dropout_kernel(seed_ref, x_ref, o_ref, *, thresh, scale, salt):
    """Independent per-element dropout on a lane-dense (tile_rows, W) slab."""
    seed = seed_ref[0].astype(jnp.uint32)
    tr, w = x_ref.shape
    # Global flat element id (uint32; wraps only past 2**32 elements).
    base = (pl.program_id(0) * tr).astype(jnp.uint32) * jnp.uint32(w)
    r = lax.broadcasted_iota(jnp.uint32, (tr, w), 0)
    c = lax.broadcasted_iota(jnp.uint32, (tr, w), 1)
    keep = _keep_mask(base + r * jnp.uint32(w) + c, seed, salt, thresh)
    x = x_ref[...]
    # TODO(synk): for bf16 one hash could cover two packed elements (two 16-bit
    # thresholds per 32-bit hash) to further cut VALU work on v7x.
    mscale = jnp.where(keep, jnp.asarray(scale, x.dtype), jnp.asarray(0, x.dtype))
    o_ref[...] = x * mscale


def _sync_dropout_kernel(seed_ref, x_ref, o_ref, *, thresh, scale, salt, g, feat):
    """Row-synchronised dropout.  g logical (b, n) rows are folded into each
    physical row (g == 1: unfolded layout, hash once per row at (tile_rows, 1))."""
    seed = seed_ref[0].astype(jnp.uint32)
    tr, w = x_ref.shape
    row0 = (pl.program_id(0) * tr).astype(jnp.uint32) * jnp.uint32(g)
    if g == 1:
        # One hash per (b, n) row; per-element work is a single broadcast mul.
        row = row0 + lax.broadcasted_iota(jnp.uint32, (tr, 1), 0)
    else:
        r = lax.broadcasted_iota(jnp.uint32, (tr, w), 0)
        pc = lax.broadcasted_iota(jnp.uint32, (tr, w), 1)
        # pc // feat for pc < g*feat via g-1 compares (no vector integer divide).
        q = (pc >= jnp.uint32(feat)).astype(jnp.uint32)
        for j in range(2, g):
            q = q + (pc >= jnp.uint32(j * feat)).astype(jnp.uint32)
        row = row0 + r * jnp.uint32(g) + q
    keep = _keep_mask(row, seed, salt, thresh)
    x = x_ref[...]
    mscale = jnp.where(keep, jnp.asarray(scale, x.dtype), jnp.asarray(0, x.dtype))
    o_ref[...] = x * mscale


# ---------------------------------------------------------------------------
# Launch helpers
# ---------------------------------------------------------------------------

def _launch(kernel, xr, seed_arr):
    rows, width = xr.shape
    tr = _tile_rows(rows, width, xr.dtype.itemsize)
    grid = _ceil_div(rows, tr)
    nbytes = xr.size * xr.dtype.itemsize
    return pl.pallas_call(
        kernel,
        out_shape=jax.ShapeDtypeStruct((rows, width), xr.dtype),
        grid_spec=pltpu.PrefetchScalarGridSpec(
            num_scalar_prefetch=1,
            grid=(grid,),
            in_specs=[pl.BlockSpec((tr, width), lambda i, s: (i, 0))],
            out_specs=pl.BlockSpec((tr, width), lambda i, s: (i, 0)),
        ),
        # "parallel" keeps the row axis megacore-shardable; on v7x this could
        # be pltpu.CORE_PARALLEL to split explicitly across both TensorCores.
        compiler_params=pltpu.CompilerParams(
            dimension_semantics=("parallel",),
            vmem_limit_bytes=_VMEM_LIMIT_BYTES),
        cost_estimate=pl.CostEstimate(flops=16 * xr.size, transcendentals=0,
                                      bytes_accessed=2 * nbytes),
    )(seed_arr, xr)


def _elem_dropout(x2, seed_arr, thresh, scale, salt):
    """Non-sync dropout on a (rows, feat) slab: flat lane-dense repack."""
    rows, feat = x2.shape
    total = rows * feat
    width = 0
    for w in (4 * _LANES, 2 * _LANES, _LANES):      # widest divisor -> no pad copy
        if total % w == 0:
            width = w
            break
    pad = 0 if width else (-total) % (4 * _LANES)
    width = width or 4 * _LANES
    flat = x2.reshape(-1)
    if pad:
        flat = jnp.pad(flat, (0, pad))
    xr = flat.reshape((total + pad) // width, width)
    kern = functools.partial(_elem_dropout_kernel, thresh=thresh, scale=scale,
                             salt=salt)
    out = _launch(kern, xr, seed_arr).reshape(-1)
    if pad:
        out = out[:total]
    return out.reshape(rows, feat)


def _sync_dropout(x2, seed_arr, thresh, scale, salt):
    """Sync dropout on a (rows, feat) slab: one mask per row, shared via salt."""
    rows, feat = x2.shape
    g = 1
    if feat % _LANES != 0:
        fold = _LANES // math.gcd(feat, _LANES)      # lcm(feat, 128) / feat
        if fold <= 8:                                # cheap lane-compare chain
            g = fold
    if g == 1:
        # Already lane-dense (feat % 128 == 0) or pathological width fallback.
        kern = functools.partial(_sync_dropout_kernel, thresh=thresh,
                                 scale=scale, salt=salt, g=1, feat=feat)
        return _launch(kern, x2, seed_arr)
    pad_rows = (-rows) % g
    xp = jnp.pad(x2, ((0, pad_rows), (0, 0))) if pad_rows else x2
    xr = xp.reshape((rows + pad_rows) // g, g * feat)
    kern = functools.partial(_sync_dropout_kernel, thresh=thresh, scale=scale,
                             salt=salt, g=g, feat=feat)
    out = _launch(kern, xr, seed_arr).reshape(rows + pad_rows, feat)
    if pad_rows:
        out = out[:rows]
    return out


# ---------------------------------------------------------------------------
# Module wrapper
# ---------------------------------------------------------------------------

class GVDropoutPallas:
    """JAX/Pallas port of GVDropout (no learned parameters).

    Masks are a deterministic function of (seed, shapes); pass a fresh seed per
    training step to resample.
    """

    def __init__(self, dropout=0.0, sync=False):
        self.dropout = float(dropout)
        self.sync = bool(sync)

    def __call__(self, sca_vec, seed=0):
        if self.dropout == 0:
            return sca_vec
        sca, vec = sca_vec
        if self.dropout >= 1.0:          # torch.nn.Dropout(p=1) zeroes everything
            return jnp.zeros_like(sca), jnp.zeros_like(vec)

        B, N, Fs = sca.shape
        _, _, three, Fv = vec.shape
        rows = B * N
        seed_arr = jnp.asarray(seed, dtype=jnp.int32).reshape((1,))
        thresh = int(round(self.dropout * float(1 << 24)))   # drop if hash24 < thresh
        scale = 1.0 / (1.0 - self.dropout)

        sca2 = sca.reshape(rows, Fs)
        vec2 = vec.reshape(rows, three * Fv)
        if self.sync:
            sca_o = _sync_dropout(sca2, seed_arr, thresh, scale, _SALT_SYNC)
            vec_o = _sync_dropout(vec2, seed_arr, thresh, scale, _SALT_SYNC)
        else:
            sca_o = _elem_dropout(sca2, seed_arr, thresh, scale, _SALT_SCA)
            vec_o = _elem_dropout(vec2, seed_arr, thresh, scale, _SALT_VEC)
        return sca_o.reshape(B, N, Fs), vec_o.reshape(B, N, three, Fv)


if __name__ == "__main__":
    key = jax.random.PRNGKey(0)
    k1, k2, k3, k4 = jax.random.split(key, 4)

    # --- small GNN-like shapes (narrow features -> flat / folded lane-dense paths)
    B, N, Fs, Fv = 2, 8, 32, 32
    sca = jax.random.normal(k1, (B, N, Fs), dtype=jnp.float32)
    vec = jax.random.normal(k2, (B, N, 3, Fv), dtype=jnp.float32)
    p = 0.5
    scale = 1.0 / (1.0 - p)

    # dropout == 0 -> identity
    ident = GVDropoutPallas(dropout=0.0)((sca, vec))
    assert (ident[0] is sca) and (ident[1] is vec)

    # non-sync: independent elementwise dropout, values in {0, x/(1-p)}
    sca_d, vec_d = GVDropoutPallas(dropout=p, sync=False)((sca, vec), seed=123)
    jax.block_until_ready((sca_d, vec_d))
    for x, xd in ((sca, sca_d), (vec, vec_d)):
        is_zero = xd == 0
        is_scaled = jnp.abs(xd - scale * x) < 1e-5
        assert bool(jnp.all(is_zero | is_scaled)), \
            "non-sync dropout: values not in {0, x/(1-p)}"
        assert bool(jnp.any(is_zero)) and bool(jnp.any(~is_zero)), \
            "non-sync dropout: degenerate mask"

    # sync: one mask per (b, n) row shared across sca features and vec dims
    sca_s, vec_s = GVDropoutPallas(dropout=p, sync=True)((sca, vec), seed=7)
    jax.block_until_ready((sca_s, vec_s))
    keep_s = jnp.abs(sca_s.reshape(B * N, Fs)) > 0
    keep_v = jnp.abs(vec_s.reshape(B * N, 3 * Fv)) > 0
    assert bool(jnp.all(keep_s.any(-1) == keep_s.all(-1))), \
        "sync dropout: sca mask not constant per row"
    assert bool(jnp.all(keep_v.any(-1) == keep_v.all(-1))), \
        "sync dropout: vec mask not constant per row"
    assert bool(jnp.all(keep_s.any(-1) == keep_v.any(-1))), \
        "sync dropout: sca/vec masks differ"
    surv_err = jnp.where(keep_s,
                         jnp.abs(sca_s.reshape(B * N, Fs)
                                 - scale * sca.reshape(B * N, Fs)), 0.0)
    assert bool(jnp.all(surv_err < 1e-5)), "sync dropout: wrong survivor scaling"

    # --- wider features + ragged row count (dense-row sync path + pad paths)
    B2, N2, Fs2, Fv2 = 3, 5, 128, 64          # 3*Fv2 = 192, B2*N2 = 15 rows
    sca2 = jax.random.normal(k3, (B2, N2, Fs2), dtype=jnp.float32)
    vec2 = jax.random.normal(k4, (B2, N2, 3, Fv2), dtype=jnp.float32)
    p2 = 0.25
    s2 = 1.0 / (1.0 - p2)
    sca2_d, vec2_d = GVDropoutPallas(dropout=p2, sync=False)((sca2, vec2), seed=11)
    sca2_s, vec2_s = GVDropoutPallas(dropout=p2, sync=True)((sca2, vec2), seed=11)
    jax.block_until_ready((sca2_d, vec2_d, sca2_s, vec2_s))
    for x, xd in ((sca2, sca2_d), (vec2, vec2_d), (sca2, sca2_s), (vec2, vec2_s)):
        ok = (xd == 0) | (jnp.abs(xd - s2 * x) < 1e-5)
        assert bool(jnp.all(ok)), "wide-feature dropout: bad value set"
    ks2 = jnp.abs(sca2_s.reshape(B2 * N2, Fs2)) > 0
    kv2 = jnp.abs(vec2_s.reshape(B2 * N2, 3 * Fv2)) > 0
    assert bool(jnp.all(ks2.any(-1) == ks2.all(-1))), "wide sync: sca row mask broken"
    assert bool(jnp.all(kv2.any(-1) == kv2.all(-1))), "wide sync: vec row mask broken"
    assert bool(jnp.all(ks2.any(-1) == kv2.any(-1))), "wide sync: sca/vec masks differ"

    print("KERNEL_OK")
</pallas_src>

<mosaic_0001>
module attributes {stable_mosaic.version = 11 : i64} {
  func.func @_elem_dropout_kernel(%arg0: i32, %arg1: memref<1xi32, #tpu.memory_space<smem>>, %arg2: memref<1x512xf32, #tpu.memory_space<vmem>>, %arg3: memref<1x512xf32, #tpu.memory_space<vmem>>) attributes {dimension_semantics = [#tpu.dimension_semantics<parallel>], iteration_bounds = array<i64: 1>, scalar_prefetch = 1 : i64, scratch_operands = 0 : i64, tpu.core_type = #tpu.core_type<tc>, window_params = [{transform_indices = @transform_0, window_bounds = array<i64: 1, 512>}, {transform_indices = @transform_1, window_bounds = array<i64: 1, 512>}]} {
    %c0 = arith.constant 0 : index
    %0 = memref.load %arg1[%c0] : memref<1xi32, #tpu.memory_space<smem>>
    %c1_i32 = arith.constant 1 : i32
    %1 = arith.muli %arg0, %c1_i32 : i32
    %c512_i32 = arith.constant 512 : i32
    %2 = arith.muli %1, %c512_i32 : i32
    %3 = tpu.iota {dimensions = array<i32: 0>} : vector<1x512xi32>
    %4 = tpu.iota {dimensions = array<i32: 1>} : vector<1x512xi32>
    %c512_i32_0 = arith.constant 512 : i32
    %5 = vector.broadcast %c512_i32_0 : i32 to vector<1x512xi32>
    %6 = arith.muli %3, %5 : vector<1x512xi32>
    %7 = vector.broadcast %2 : i32 to vector<1x512xi32>
    %8 = arith.addi %7, %6 : vector<1x512xi32>
    %9 = arith.addi %8, %4 : vector<1x512xi32>
    %c-1640531527_i32 = arith.constant -1640531527 : i32
    %10 = arith.muli %0, %c-1640531527_i32 : i32
    %c-2048144789_i32 = arith.constant -2048144789 : i32
    %11 = arith.addi %10, %c-2048144789_i32 : i32
    %12 = vector.broadcast %11 : i32 to vector<1x512xi32>
    %13 = arith.xori %9, %12 : vector<1x512xi32>
    %c16_i32 = arith.constant 16 : i32
    %14 = vector.broadcast %c16_i32 : i32 to vector<1x512xi32>
    %15 = arith.shrui %13, %14 : vector<1x512xi32>
    %16 = arith.xori %13, %15 : vector<1x512xi32>
    %c2146121005_i32 = arith.constant 2146121005 : i32
    %17 = vector.broadcast %c2146121005_i32 : i32 to vector<1x512xi32>
    %18 = arith.muli %16, %17 : vector<1x512xi32>
    %c15_i32 = arith.constant 15 : i32
    %19 = vector.broadcast %c15_i32 : i32 to vector<1x512xi32>
    %20 = arith.shrui %18, %19 : vector<1x512xi32>
    %21 = arith.xori %18, %20 : vector<1x512xi32>
    %c-2073254261_i32 = arith.constant -2073254261 : i32
    %22 = vector.broadcast %c-2073254261_i32 : i32 to vector<1x512xi32>
    %23 = arith.muli %21, %22 : vector<1x512xi32>
    %c16_i32_1 = arith.constant 16 : i32
    %24 = vector.broadcast %c16_i32_1 : i32 to vector<1x512xi32>
    %25 = arith.shrui %23, %24 : vector<1x512xi32>
    %26 = arith.xori %23, %25 : vector<1x512xi32>
    %c16777215_i32 = arith.constant 16777215 : i32
    %27 = vector.broadcast %c16777215_i32 : i32 to vector<1x512xi32>
    %28 = arith.andi %26, %27 : vector<1x512xi32>
    %c8388608_i32 = arith.constant 8388608 : i32
    %29 = vector.broadcast %c8388608_i32 : i32 to vector<1x512xi32>
    %30 = arith.cmpi uge, %28, %29 : vector<1x512xi32>
    %c0_2 = arith.constant 0 : index
    %c0_3 = arith.constant 0 : index
    %31 = vector.load %arg2[%c0_2, %c0_3] : memref<1x512xf32, #tpu.memory_space<vmem>>, vector<1x512xf32>
    %cst = arith.constant 2.000000e+00 : f32
    %cst_4 = arith.constant 0.000000e+00 : f32
    %32 = vector.broadcast %cst : f32 to vector<1x512xf32>
    %33 = vector.broadcast %cst_4 : f32 to vector<1x512xf32>
    %34 = arith.select %30, %32, %33 : vector<1x512xi1>, vector<1x512xf32>
    %35 = arith.mulf %31, %34 : vector<1x512xf32>
    %c0_5 = arith.constant 0 : index
    %c0_6 = arith.constant 0 : index
    %36 = vector.load %arg3[%c0_5, %c0_6] : memref<1x512xf32, #tpu.memory_space<vmem>>, vector<1x512xf32>
    tpu.vector_store %arg3[%c0_5, %c0_6], %35 {strides = array<i32>} : memref<1x512xf32, #tpu.memory_space<vmem>>, vector<1x512xf32>,
    return
  }
  func.func @transform_0(%arg0: i32, %arg1: memref<1xi32, #tpu.memory_space<smem>>) -> (i32, i32) {
    %c0_i32 = arith.constant 0 : i32
    %c0_i32_0 = arith.constant 0 : i32
    return %arg0, %c0_i32 : i32, i32
  }
  func.func @transform_1(%arg0: i32, %arg1: memref<1xi32, #tpu.memory_space<smem>>) -> (i32, i32) {
    %c0_i32 = arith.constant 0 : i32
    %c0_i32_0 = arith.constant 0 : i32
    return %arg0, %c0_i32 : i32, i32
  }
}

</mosaic_0001>

<llo_original>
// kernel: tpu_custom_call.1
$region0: #{tpu_custom_call.1}
  #allocation0 [shape = 'u32[]', space=smem, size = 0x4, offset = 0x4, fixed_abs, tag = 'smem constant byte address 0x4 - core index']
  #allocation1 [shape = 'u32[72,128]{1,0:T(1,128)}', space=vmem, size = 0x9000, scoped, tag = 'internal scratch']
  #allocation2 [shape = 's32[1]{0}', space=sflag, size = 0x4, scoped, tag = 'scoped memory for tpu_custom_call.1']
  #allocation3 [shape = 's32[1]{0:T(128)S(6)}', space=smem, size = 0x200, scoped, tag = 'prefetched SMEM operand 0']
  %s0 = inlined_call_operand.<no memory space> [shape: s32[1], index: 0, kind: input, shape index: {}]
  %s1 = inlined_call_operand.hbm [shape: f32[1,512], index: 1, kind: input, shape index: {}]
  %s2 = inlined_call_operand.hbm [shape: f32[1,512], index: 2, kind: output, shape index: {}]
  %s3 = sld [smem:[#allocation0]]
  $region18: #{tpu_custom_call.1} parent=0
    _
  %s5 = ssub.s32 1, %s3
  %s6 = scalar_select 0, %s5, %s3
  %7 = sst [smem:[#allocation3]] %s0
  $region1: #{tpu_custom_call.1} parent=0
    #allocation4 [shape = 'u8[2048]{0}', space=vmem, size = 0x800, scoped, tag = 'input window, operand 1, single buffered']
    #allocation5 [shape = 's32[1]{0}', space=sflag, size = 0x4, scoped, tag = 'scoped memory for tpu_custom_call.1']
    #allocation6 [shape = 's32[1]{0}', space=sflag, size = 0x4, scoped, tag = 'scoped memory for tpu_custom_call.1']
    #allocation7 [shape = 'u8[2048]{0}', space=vmem, size = 0x800, scoped, tag = 'output window, operand 0, single buffered']
    %8 = vsyncpa [#allocation5], 0
    %9 = vsyncpa [#allocation6], 0
    // Predicated region
    $region2: #{tpu_custom_call.1} parent=1 // pred_check
      _
    $region3: #{tpu_custom_call.1} parent=1 // pred_check_branch
      %11 = sbr.rel (0) target = $region5
    $region4: #{tpu_custom_call.1} parent=1 // pred_region
      %13 = vsyncadd [#allocation5], 0
      %s15 = sshll.u32 %s1, 4
      %s16 = int_to_ptr.hbm [resolvable:$true] %s15
      %s17 = sshll.u32 [#allocation4], 4
      %s18 = int_to_ptr.vmem [resolvable:$true] %s17
      %20 = dma.hbm_to_vmem [thread:$0]  %s16, 64, %s18, [#allocation5]
    $region5: #{tpu_custom_call.1} parent=1 // pred_fallthru
      _
    // Predicated region
    $region6: #{tpu_custom_call.1} parent=1 // pred_check
      _
    $region7: #{tpu_custom_call.1} parent=1 // pred_check_branch
      %22 = sbr.rel (0) target = $region9
    $region8: #{tpu_custom_call.1} parent=1 // pred_region
      %24 = dma.done [#allocation5], 64
    $region9: #{tpu_custom_call.1} parent=1 // pred_fallthru
      _
    %s25 = sld [smem:[#allocation3]]
    %s26 = smul.u32 0, 512
    %v27 = vlaneseq
    %v28 = vshrl.u32 %v27, 7
    %v29 = vlaneseq
    %v30 = vand.u32 %v29, 127
    %v31 = vadd.s32 %v30, 128
    %v32 = vadd.s32 %v30, 256
    %v33 = vadd.s32 %v30, 384
    %v34 = vmul.u32 %v28, 512
    %v35 = vstv %s26
    %v36 = vadd.s32 %v35, %v34
    %v37 = vadd.s32 %v36, %v30
    %v38 = vadd.s32 %v36, %v31
    %v39 = vadd.s32 %v36, %v32
    %v40 = vadd.s32 %v36, %v33
    %s41 = smul.u32 %s25, 2654435769
    %s42 = sadd.s32 %s41, 2246822507
    %v43 = vstv %s42
    %v44 = vxor.u32 %v37, %v43
    %v45 = vxor.u32 %v38, %v43
    %v46 = vxor.u32 %v39, %v43
    %v47 = vxor.u32 %v40, %v43
    %v48 = vshrl.u32 %v44, 16
    %v49 = vshrl.u32 %v45, 16
    %v50 = vshrl.u32 %v46, 16
    %v51 = vshrl.u32 %v47, 16
    %v52 = vxor.u32 %v44, %v48
    %v53 = vxor.u32 %v45, %v49
    %v54 = vxor.u32 %v46, %v50
    %v55 = vxor.u32 %v47, %v51
    %v56 = vmul.u32 %v52, 2146121005
    %v57 = vmul.u32 %v53, 2146121005
    %v58 = vmul.u32 %v54, 2146121005
    %v59 = vmul.u32 %v55, 2146121005
    %v60 = vshrl.u32 %v56, 15
    %v61 = vshrl.u32 %v57, 15
    %v62 = vshrl.u32 %v58, 15
    %v63 = vshrl.u32 %v59, 15
    %v64 = vxor.u32 %v56, %v60
    %v65 = vxor.u32 %v57, %v61
    %v66 = vxor.u32 %v58, %v62
    %v67 = vxor.u32 %v59, %v63
    %v68 = vmul.u32 %v64, 2221713035
    %v69 = vmul.u32 %v65, 2221713035
    %v70 = vmul.u32 %v66, 2221713035
    %v71 = vmul.u32 %v67, 2221713035
    %v72 = vshrl.u32 %v68, 16
    %v73 = vshrl.u32 %v69, 16
    %v74 = vshrl.u32 %v70, 16
    %v75 = vshrl.u32 %v71, 16
    %v76 = vxor.u32 %v68, %v72
    %v77 = vxor.u32 %v69, %v73
    %v78 = vxor.u32 %v70, %v74
    %v79 = vxor.u32 %v71, %v75
    %v80 = vand.u32 %v76, 16777215
    %v81 = vand.u32 %v77, 16777215
    %v82 = vand.u32 %v78, 16777215
    %v83 = vand.u32 %v79, 16777215
    %v84 = vadd.s32 %v80, 2147483648
    %vm86 = vcmp.ge.s32.totalorder %v84, 2155872256
    %v87 = vadd.s32 %v81, 2147483648
    %vm89 = vcmp.ge.s32.totalorder %v87, 2155872256
    %v90 = vadd.s32 %v82, 2147483648
    %vm92 = vcmp.ge.s32.totalorder %v90, 2155872256
    %v93 = vadd.s32 %v83, 2147483648
    %vm95 = vcmp.ge.s32.totalorder %v93, 2155872256
    %v96 = vld [vmem:[#allocation4] sm:$0xf]
    %v97 = vsel %vm86, 2.0, 0.0
    %v98 = vsel %vm89, 2.0, 0.0
    %v99 = vsel %vm92, 2.0, 0.0
    %v100 = vsel %vm95, 2.0, 0.0
    %v105 = vrot.slane %v98, 7
    %v106 = vrot.slane %v99, 6
    %v107 = vrot.slane %v100, 5
    %vm108 = vcmask 1040384
    %v109 = vsel %vm108, %v97, %v105
    %vm110 = vcmask 1042434
    %v111 = vsel %vm110, %v106, %v107
    %vm112 = vcmask 1041408
    %v113 = vsel %vm112, %v109, %v111
    %v115 = vmul.f32 %v96, %v113
    %v116 = vlaneseq
    %vm117 = vcmp.ge.s32.totalorder %v116, 0
    %vm118 = vcmp.lt.s32.totalorder %v116, 512
    %vm119 = vmand %vm117, %vm118
    %120 = vst.msk [vmem:[#allocation7] sm:$0xf] %vm119, %v115
    // Predicated region
    $region10: #{tpu_custom_call.1} parent=1 // pred_check
      _
    $region11: #{tpu_custom_call.1} parent=1 // pred_check_branch
      %122 = sbr.rel (0) target = $region13
    $region12: #{tpu_custom_call.1} parent=1 // pred_region
      %124 = vsyncadd [#allocation6], 0
      %s126 = sshll.u32 [#allocation7], 4
      %s127 = int_to_ptr.vmem [resolvable:$true] %s126
      %s128 = sshll.u32 %s2, 4
      %s129 = int_to_ptr.hbm [resolvable:$true] %s128
      %131 = dma.vmem_to_hbm [thread:$0]  %s127, 64, %s129, [#allocation6]
    $region13: #{tpu_custom_call.1} parent=1 // pred_fallthru
      _
    // Predicated region
    $region14: #{tpu_custom_call.1} parent=1 // pred_check
      _
    $region15: #{tpu_custom_call.1} parent=1 // pred_check_branch
      %133 = sbr.rel (0) target = $region17
    $region16: #{tpu_custom_call.1} parent=1 // pred_region
      %135 = dma.done [#allocation6], 64
    $region17: #{tpu_custom_call.1} parent=1 // pred_fallthru
      _
    %136 = vsyncpa [#allocation5], 1
    %137 = vsyncpa [#allocation6], 1

</llo_original>
